<compile_context>
chip_gen: v5e
topology: v5e:2x2
jax: 0.10.0
libtpu: 0.0.40
codegen_flags: <defaults>
</compile_context>

<pallas_src>
import math

import jax
import jax.numpy as jnp
from jax.experimental import pallas as pl
from jax.experimental.pallas import tpu as pltpu


def gru_chunk_kernel(x_ref, h0_ref, wx_ref, bx_ref, wh_ref, bh_ref,
                     out_ref, h_carry, xg_ref):
    """Process one chunk of Tc timesteps; hidden state carried across chunks
    in `h_carry` (VMEM scratch) and across in-chunk steps in vregs."""
    c = pl.program_id(0)
    B, H = h0_ref.shape
    Tc = x_ref.shape[0] // B

    @pl.when(c == 0)
    def _():
        h_carry[...] = h0_ref[...].astype(jnp.float32)

    # --- x-path for the whole chunk: one batched matmul, bias folded in. ---
    # (Tc*B, In) @ (In, 3H) -> (Tc*B, 3H), gate order [r | z | n].
    xg_ref[...] = (jnp.dot(x_ref[...], wx_ref[...],
                           preferred_element_type=jnp.float32)
                   + bx_ref[...])

    # Hoisted out of the serial loop: weight vregs + bias broadcast.
    wh = wh_ref[...]          # (H, 3H)
    bh = bh_ref[...]          # (1, 3H)

    def step(t, h):
        row = pl.multiple_of(t * B, B)
        xg = xg_ref[pl.ds(row, B), :]                              # (B, 3H)
        # Single fused h-side matmul on the serial chain.
        hg = jnp.dot(h, wh, preferred_element_type=jnp.float32) + bh
        # reset/update gates: sigmoid via tanh -> EUP slot.
        rz = 0.5 * (jnp.tanh(0.5 * (xg[:, :2 * H] + hg[:, :2 * H])) + 1.0)
        resetgate = rz[:, :H]
        inputgate = rz[:, H:]
        # n-gate: bh_n sits inside the reset-gated term (PyTorch semantics).
        newgate = jnp.tanh(xg[:, 2 * H:] + resetgate * hg[:, 2 * H:])
        hy = newgate + inputgate * (h - newgate)
        out_ref[pl.ds(row, B), :] = hy.astype(out_ref.dtype)
        return hy

    h_carry[...] = jax.lax.fori_loop(0, Tc, step, h_carry[...], unroll=True)


def pack_gru_params(wx, bx, wh, bh):
    """One-time repack of PyTorch-layout GRUCell params (hoisted off hot path).

    wx: (3H, In), wh: (3H, H), bx/bh: (3H,)  [gate order r, z, n]
    Returns pre-transposed fused slabs consumed by the kernel:
      wx_T: (In, 3H), bx: (1, 3H), wh_T: (H, 3H), bh: (1, 3H)
    """
    H3 = wx.shape[0]
    wx_T = jnp.asarray(wx, jnp.float32).T              # (In, 3H)
    wh_T = jnp.asarray(wh, jnp.float32).T              # (H, 3H)
    bx2 = jnp.asarray(bx, jnp.float32).reshape(1, H3)  # (1, 3H)
    bh2 = jnp.asarray(bh, jnp.float32).reshape(1, H3)  # (1, 3H)
    return wx_T, bx2, wh_T, bh2


def gru_sequence(xs, h0, params, *, chunk=16):
    """Run the GRU cell over a whole sequence in ONE pallas_call.

    xs: (T, B, In), h0: (B, H)  ->  (T, B, H) hidden states.
    Weights stay VMEM-resident across all chunks (constant index_map); the
    hidden state is carried in a VMEM scratch buffer between chunks and in
    vregs within a chunk.
    """
    T, B, In = xs.shape
    H = h0.shape[1]
    wx_T, bx, wh_T, bh = params

    Tc = min(T, chunk)
    if (Tc * B) % 8 != 0:
        # Keep block shapes legal ((8,128) rule) for odd batch sizes.
        Tc = T
    n_chunks = pl.cdiv(T, Tc)
    T_pad = n_chunks * Tc
    if T_pad != T:
        pad = jnp.zeros((T_pad - T, B, In), xs.dtype)
        xs = jnp.concatenate([xs, pad], axis=0)

    # Free, contiguous wrapper-side reshape: present x as a 2D (T*B, In) slab
    # so the in-kernel chunk matmul needs no reshapes at all.
    x2 = xs.reshape(T_pad * B, In)

    out = pl.pallas_call(
        gru_chunk_kernel,
        out_shape=jax.ShapeDtypeStruct((T_pad * B, H), xs.dtype),
        grid=(n_chunks,),
        in_specs=[
            pl.BlockSpec((Tc * B, In), lambda c: (c, 0)),   # x chunk
            pl.BlockSpec((B, H), lambda c: (0, 0)),          # h0 (resident)
            pl.BlockSpec(wx_T.shape, lambda c: (0, 0)),       # (In, 3H)
            pl.BlockSpec(bx.shape, lambda c: (0, 0)),         # (1, 3H)
            pl.BlockSpec(wh_T.shape, lambda c: (0, 0)),       # (H, 3H)
            pl.BlockSpec(bh.shape, lambda c: (0, 0)),         # (1, 3H)
        ],
        out_specs=pl.BlockSpec((Tc * B, H), lambda c: (c, 0)),
        scratch_shapes=[
            pltpu.VMEM((B, H), jnp.float32),            # cross-chunk h carry
            pltpu.VMEM((Tc * B, 3 * H), jnp.float32),   # chunk x-projections
        ],
        compiler_params=pltpu.CompilerParams(
            # Time/chunk axis is a true loop-carried recurrence.
            dimension_semantics=("arbitrary",),
        ),
    )(x2, h0, wx_T, bx, wh_T, bh)

    return out.reshape(T_pad, B, H)[:T]


def gru_cell(x, hidden, params):
    """Single-step GRUCell forward (the original module semantics)."""
    x = x.reshape(-1, x.shape[-1])        # mirrors x.view(-1, x.size(1))
    return gru_sequence(x[None], hidden, params)[0]


# ----------------------------- references ----------------------------------

def gru_cell_ref(x, hidden, wx, bx, wh, bh):
    gate_x = x @ wx.T + bx
    gate_h = hidden @ wh.T + bh
    H = hidden.shape[1]
    i_r, i_i, i_n = gate_x[:, :H], gate_x[:, H:2 * H], gate_x[:, 2 * H:]
    h_r, h_i, h_n = gate_h[:, :H], gate_h[:, H:2 * H], gate_h[:, 2 * H:]
    resetgate = jax.nn.sigmoid(i_r + h_r)
    inputgate = jax.nn.sigmoid(i_i + h_i)
    newgate = jnp.tanh(i_n + resetgate * h_n)
    return newgate + inputgate * (hidden - newgate)


def gru_sequence_ref(xs, h0, wx, bx, wh, bh):
    h = h0
    outs = []
    for t in range(xs.shape[0]):
        h = gru_cell_ref(xs[t], h, wx, bx, wh, bh)
        outs.append(h)
    return jnp.stack(outs, axis=0)


# ------------------------------- demo ---------------------------------------

if __name__ == "__main__":
    B = 8
    INPUT_SIZE = 32
    HIDDEN_SIZE = 32
    SEQ_LEN = 16

    key = jax.random.PRNGKey(0)
    k_x, k_h, k_wx, k_bx, k_wh, k_bh, k_seq = jax.random.split(key, 7)

    # reset_parameters(): uniform(-std, std), std = 1/sqrt(hidden_size)
    std = 1.0 / math.sqrt(HIDDEN_SIZE)
    wx = jax.random.uniform(k_wx, (3 * HIDDEN_SIZE, INPUT_SIZE),
                            minval=-std, maxval=std, dtype=jnp.float32)
    bx = jax.random.uniform(k_bx, (3 * HIDDEN_SIZE,),
                            minval=-std, maxval=std, dtype=jnp.float32)
    wh = jax.random.uniform(k_wh, (3 * HIDDEN_SIZE, HIDDEN_SIZE),
                            minval=-std, maxval=std, dtype=jnp.float32)
    bh = jax.random.uniform(k_bh, (3 * HIDDEN_SIZE,),
                            minval=-std, maxval=std, dtype=jnp.float32)

    # One-time parameter repack (hoisted out of the hot path).
    params = pack_gru_params(wx, bx, wh, bh)

    x = jax.random.normal(k_x, (B, INPUT_SIZE), dtype=jnp.float32)
    hidden = jax.random.normal(k_h, (B, HIDDEN_SIZE), dtype=jnp.float32)
    xs = jax.random.normal(k_seq, (SEQ_LEN, B, INPUT_SIZE), dtype=jnp.float32)

    # --- single-step (module forward) ---
    hy = gru_cell(x, hidden, params)
    jax.block_until_ready(hy)
    hy_ref = gru_cell_ref(x, hidden, wx, bx, wh, bh)
    assert hy.shape == (B, HIDDEN_SIZE)
    assert jnp.allclose(hy, hy_ref, atol=1e-4, rtol=1e-4), "single-step mismatch"

    # --- full sequence, one pallas_call, x-path batched, h-path serial ---
    ys = gru_sequence(xs, hidden, params)
    jax.block_until_ready(ys)
    ys_ref = gru_sequence_ref(xs, hidden, wx, bx, wh, bh)
    assert ys.shape == (SEQ_LEN, B, HIDDEN_SIZE)
    assert jnp.allclose(ys, ys_ref, atol=1e-4, rtol=1e-4), "sequence mismatch"

    print("KERNEL_OK")
</pallas_src>

<mosaic_0001>
module attributes {stable_mosaic.version = 11 : i64} {
  func.func @gru_chunk_kernel(%arg0: i32, %arg1: memref<8x32xf32, #tpu.memory_space<vmem>>, %arg2: memref<8x32xf32, #tpu.memory_space<vmem>>, %arg3: memref<32x96xf32, #tpu.memory_space<vmem>>, %arg4: memref<1x96xf32, #tpu.memory_space<vmem>>, %arg5: memref<32x96xf32, #tpu.memory_space<vmem>>, %arg6: memref<1x96xf32, #tpu.memory_space<vmem>>, %arg7: memref<8x32xf32, #tpu.memory_space<vmem>>, %arg8: memref<8x32xf32, #tpu.memory_space<vmem>>, %arg9: memref<8x96xf32, #tpu.memory_space<vmem>>) attributes {dimension_semantics = [#tpu.dimension_semantics<arbitrary>], iteration_bounds = array<i64: 1>, scalar_prefetch = 0 : i64, scratch_operands = 2 : i64, tpu.core_type = #tpu.core_type<tc>, window_params = [{transform_indices = @transform_0, window_bounds = array<i64: 8, 32>}, {pipeline_mode = #tpu.pipeline_mode<synchronous>, transform_indices = @transform_1, window_bounds = array<i64: 8, 32>}, {pipeline_mode = #tpu.pipeline_mode<synchronous>, transform_indices = @transform_2, window_bounds = array<i64: 32, 96>}, {pipeline_mode = #tpu.pipeline_mode<synchronous>, transform_indices = @transform_3, window_bounds = array<i64: 1, 96>}, {pipeline_mode = #tpu.pipeline_mode<synchronous>, transform_indices = @transform_4, window_bounds = array<i64: 32, 96>}, {pipeline_mode = #tpu.pipeline_mode<synchronous>, transform_indices = @transform_5, window_bounds = array<i64: 1, 96>}, {transform_indices = @transform_6, window_bounds = array<i64: 8, 32>}]} {
    %c0_i32 = arith.constant 0 : i32
    %0 = arith.cmpi eq, %arg0, %c0_i32 : i32
    %1 = arith.extui %0 : i1 to i32
    %c0_i32_0 = arith.constant 0 : i32
    %2 = arith.cmpi ne, %1, %c0_i32_0 : i32
    scf.if %2 {
      %c0_23 = arith.constant 0 : index
      %c0_24 = arith.constant 0 : index
      %43 = vector.load %arg2[%c0_23, %c0_24] : memref<8x32xf32, #tpu.memory_space<vmem>>, vector<8x32xf32>
      %c0_25 = arith.constant 0 : index
      %c0_26 = arith.constant 0 : index
      %44 = vector.load %arg8[%c0_25, %c0_26] : memref<8x32xf32, #tpu.memory_space<vmem>>, vector<8x32xf32>
      tpu.vector_store %arg8[%c0_25, %c0_26], %43 {strides = array<i32>} : memref<8x32xf32, #tpu.memory_space<vmem>>, vector<8x32xf32>,
    } else {
    }
    %c0 = arith.constant 0 : index
    %c0_1 = arith.constant 0 : index
    %3 = vector.load %arg1[%c0, %c0_1] : memref<8x32xf32, #tpu.memory_space<vmem>>, vector<8x32xf32>
    %c0_2 = arith.constant 0 : index
    %c0_3 = arith.constant 0 : index
    %4 = vector.load %arg3[%c0_2, %c0_3] : memref<32x96xf32, #tpu.memory_space<vmem>>, vector<32x96xf32>
    %cst = arith.constant dense<0.000000e+00> : vector<8x96xf32>
    %5 = tpu.matmul %3, %4, %cst {dimension_numbers = #tpu.dot_dimension_numbers<[1], [0], [0], [1], [0, 0, 1, 1], [], []>} : vector<8x32xf32>, vector<32x96xf32>, vector<8x96xf32> -> vector<8x96xf32>
    %c0_4 = arith.constant 0 : index
    %c0_5 = arith.constant 0 : index
    %6 = vector.load %arg4[%c0_4, %c0_5] : memref<1x96xf32, #tpu.memory_space<vmem>>, vector<1x96xf32>
    %7 = vector.broadcast %6 : vector<1x96xf32> to vector<8x96xf32>
    %8 = arith.addf %5, %7 : vector<8x96xf32>
    %c0_6 = arith.constant 0 : index
    %c0_7 = arith.constant 0 : index
    %9 = vector.load %arg9[%c0_6, %c0_7] : memref<8x96xf32, #tpu.memory_space<vmem>>, vector<8x96xf32>
    tpu.vector_store %arg9[%c0_6, %c0_7], %8 {strides = array<i32>} : memref<8x96xf32, #tpu.memory_space<vmem>>, vector<8x96xf32>,
    %c0_8 = arith.constant 0 : index
    %c0_9 = arith.constant 0 : index
    %10 = vector.load %arg5[%c0_8, %c0_9] : memref<32x96xf32, #tpu.memory_space<vmem>>, vector<32x96xf32>
    %c0_10 = arith.constant 0 : index
    %c0_11 = arith.constant 0 : index
    %11 = vector.load %arg6[%c0_10, %c0_11] : memref<1x96xf32, #tpu.memory_space<vmem>>, vector<1x96xf32>
    %c0_12 = arith.constant 0 : index
    %c0_13 = arith.constant 0 : index
    %12 = vector.load %arg8[%c0_12, %c0_13] : memref<8x32xf32, #tpu.memory_space<vmem>>, vector<8x32xf32>
    %c0_i32_14 = arith.constant 0 : i32
    %c8_i32 = arith.constant 8 : i32
    %13 = arith.muli %c0_i32_14, %c8_i32 : i32
    %14 = tpu.assume_multiple %13, 8 : i32
    %15 = arith.index_cast %14 : i32 to index
    %c0_15 = arith.constant 0 : index
    %16 = vector.load %arg9[%15, %c0_15] : memref<8x96xf32, #tpu.memory_space<vmem>>, vector<8x96xf32>
    %cst_16 = arith.constant dense<0.000000e+00> : vector<8x96xf32>
    %17 = tpu.matmul %12, %10, %cst_16 {dimension_numbers = #tpu.dot_dimension_numbers<[1], [0], [0], [1], [0, 0, 1, 1], [], []>} : vector<8x32xf32>, vector<32x96xf32>, vector<8x96xf32> -> vector<8x96xf32>
    %18 = vector.broadcast %11 : vector<1x96xf32> to vector<8x96xf32>
    %19 = arith.addf %17, %18 : vector<8x96xf32>
    %20 = vector.extract_strided_slice %16 {offsets = [0, 0], sizes = [8, 64], strides = [1, 1]} : vector<8x96xf32> to vector<8x64xf32>
    %21 = vector.extract_strided_slice %19 {offsets = [0, 0], sizes = [8, 64], strides = [1, 1]} : vector<8x96xf32> to vector<8x64xf32>
    %22 = arith.addf %20, %21 : vector<8x64xf32>
    %cst_17 = arith.constant 5.000000e-01 : f32
    %23 = vector.broadcast %cst_17 : f32 to vector<8x64xf32>
    %24 = arith.mulf %23, %22 : vector<8x64xf32>
    %25 = math.tanh %24 : vector<8x64xf32>
    %cst_18 = arith.constant 1.000000e+00 : f32
    %26 = vector.broadcast %cst_18 : f32 to vector<8x64xf32>
    %27 = arith.addf %25, %26 : vector<8x64xf32>
    %cst_19 = arith.constant 5.000000e-01 : f32
    %28 = vector.broadcast %cst_19 : f32 to vector<8x64xf32>
    %29 = arith.mulf %28, %27 : vector<8x64xf32>
    %30 = vector.extract_strided_slice %29 {offsets = [0, 0], sizes = [8, 32], strides = [1, 1]} : vector<8x64xf32> to vector<8x32xf32>
    %31 = vector.extract_strided_slice %29 {offsets = [0, 32], sizes = [8, 32], strides = [1, 1]} : vector<8x64xf32> to vector<8x32xf32>
    %32 = vector.extract_strided_slice %16 {offsets = [0, 64], sizes = [8, 32], strides = [1, 1]} : vector<8x96xf32> to vector<8x32xf32>
    %33 = vector.extract_strided_slice %19 {offsets = [0, 64], sizes = [8, 32], strides = [1, 1]} : vector<8x96xf32> to vector<8x32xf32>
    %34 = arith.mulf %30, %33 : vector<8x32xf32>
    %35 = arith.addf %32, %34 : vector<8x32xf32>
    %36 = math.tanh %35 : vector<8x32xf32>
    %37 = arith.subf %12, %36 : vector<8x32xf32>
    %38 = arith.mulf %31, %37 : vector<8x32xf32>
    %39 = arith.addf %36, %38 : vector<8x32xf32>
    %40 = arith.index_cast %14 : i32 to index
    %c0_20 = arith.constant 0 : index
    %41 = vector.load %arg7[%40, %c0_20] : memref<8x32xf32, #tpu.memory_space<vmem>>, vector<8x32xf32>
    tpu.vector_store %arg7[%40, %c0_20], %39 {strides = array<i32>} : memref<8x32xf32, #tpu.memory_space<vmem>>, vector<8x32xf32>,
    %c1_i32 = arith.constant 1 : i32
    %c0_21 = arith.constant 0 : index
    %c0_22 = arith.constant 0 : index
    %42 = vector.load %arg8[%c0_21, %c0_22] : memref<8x32xf32, #tpu.memory_space<vmem>>, vector<8x32xf32>
    tpu.vector_store %arg8[%c0_21, %c0_22], %39 {strides = array<i32>} : memref<8x32xf32, #tpu.memory_space<vmem>>, vector<8x32xf32>,
    return
  }
  func.func @transform_0(%arg0: i32) -> (i32, i32) {
    %c0_i32 = arith.constant 0 : i32
    %c0_i32_0 = arith.constant 0 : i32
    return %arg0, %c0_i32 : i32, i32
  }
  func.func @transform_1(%arg0: i32) -> (i32, i32) {
    %c0_i32 = arith.constant 0 : i32
    %c0_i32_0 = arith.constant 0 : i32
    %c0_i32_1 = arith.constant 0 : i32
    return %c0_i32, %c0_i32_0 : i32, i32
  }
  func.func @transform_2(%arg0: i32) -> (i32, i32) {
    %c0_i32 = arith.constant 0 : i32
    %c0_i32_0 = arith.constant 0 : i32
    %c0_i32_1 = arith.constant 0 : i32
    return %c0_i32, %c0_i32_0 : i32, i32
  }
  func.func @transform_3(%arg0: i32) -> (i32, i32) {
    %c0_i32 = arith.constant 0 : i32
    %c0_i32_0 = arith.constant 0 : i32
    %c0_i32_1 = arith.constant 0 : i32
    return %c0_i32, %c0_i32_0 : i32, i32
  }
  func.func @transform_4(%arg0: i32) -> (i32, i32) {
    %c0_i32 = arith.constant 0 : i32
    %c0_i32_0 = arith.constant 0 : i32
    %c0_i32_1 = arith.constant 0 : i32
    return %c0_i32, %c0_i32_0 : i32, i32
  }
  func.func @transform_5(%arg0: i32) -> (i32, i32) {
    %c0_i32 = arith.constant 0 : i32
    %c0_i32_0 = arith.constant 0 : i32
    %c0_i32_1 = arith.constant 0 : i32
    return %c0_i32, %c0_i32_0 : i32, i32
  }
  func.func @transform_6(%arg0: i32) -> (i32, i32) {
    %c0_i32 = arith.constant 0 : i32
    %c0_i32_0 = arith.constant 0 : i32
    return %arg0, %c0_i32 : i32, i32
  }
}

</mosaic_0001>

<llo_original>
// kernel: tpu_custom_call.1
$region0: #{tpu_custom_call.1}
  #allocation0 [shape = 'u32[]', space=smem, size = 0x4, offset = 0x4, fixed_abs, tag = 'smem constant byte address 0x4 - core index']
  #allocation1 [shape = 'u32[72,128]{1,0:T(1,128)}', space=vmem, size = 0x9000, scoped, tag = 'internal scratch']
  #allocation2 [shape = 'f32[8,32]{1,0:T(8,128)}', space=vmem, size = 0x1000, scoped, tag = 'scratch operand']
  #allocation3 [shape = 'f32[8,96]{1,0:T(8,128)}', space=vmem, size = 0x1000, scoped, tag = 'scratch operand']
  %s0 = inlined_call_operand.hbm [shape: f32[8,32], index: 0, kind: input, shape index: {}]
  %s1 = inlined_call_operand.hbm [shape: f32[8,32], index: 1, kind: input, shape index: {}]
  %s2 = inlined_call_operand.hbm [shape: f32[32,96], index: 2, kind: input, shape index: {}]
  %s3 = inlined_call_operand.vmem [shape: f32[1,96], index: 3, kind: input, shape index: {}]
  %s4 = inlined_call_operand.hbm [shape: f32[32,96], index: 4, kind: input, shape index: {}]
  %s5 = inlined_call_operand.vmem [shape: f32[1,96], index: 5, kind: input, shape index: {}]
  %s6 = inlined_call_operand.hbm [shape: f32[8,32], index: 6, kind: output, shape index: {}]
  %s7 = sld [smem:[#allocation0]]
  $region54: #{tpu_custom_call.1} parent=0
    _
  %s9 = ssub.s32 1, %s7
  %s10 = scalar_select 0, %s9, %s7
  $region1: #{tpu_custom_call.1} parent=0
    #allocation4 [shape = 'u8[4096]{0}', space=vmem, size = 0x1000, scoped, tag = 'input window, operand 0, single buffered']
    #allocation5 [shape = 's32[1]{0}', space=sflag, size = 0x4, scoped, tag = 'scoped memory for tpu_custom_call.1']
    #allocation6 [shape = 's32[1]{0}', space=sflag, size = 0x4, scoped, tag = 'scoped memory for tpu_custom_call.1']
    #allocation7 [shape = 'u8[4096]{0}', space=vmem, size = 0x1000, scoped, tag = 'input window, operand 1, single buffered']
    #allocation8 [shape = 's32[1]{0}', space=sflag, size = 0x4, scoped, tag = 'scoped memory for tpu_custom_call.1']
    #allocation9 [shape = 'u8[16384]{0}', space=vmem, size = 0x4000, scoped, tag = 'input window, operand 2, single buffered']
    #allocation10 [shape = 'u8[16384]{0}', space=vmem, size = 0x4000, scoped, tag = 'input window, operand 4, single buffered']
    #allocation11 [shape = 's32[1]{0}', space=sflag, size = 0x4, scoped, tag = 'scoped memory for tpu_custom_call.1']
    #allocation12 [shape = 'u8[4096]{0}', space=vmem, size = 0x1000, scoped, tag = 'output window, operand 0, single buffered']
    %11 = vsyncpa [#allocation5], 0
    %12 = vsyncpa [#allocation8], 0
    %13 = vsyncpa [#allocation11], 0
    %14 = vsyncpa [#allocation6], 0
    // Predicated region
    $region2: #{tpu_custom_call.1} parent=1 // pred_check
      _
    $region3: #{tpu_custom_call.1} parent=1 // pred_check_branch
      %16 = sbr.rel (0) target = $region5
    $region4: #{tpu_custom_call.1} parent=1 // pred_region
      %18 = vsyncadd [#allocation5], 0
      %s20 = sshll.u32 %s0, 4
      %s21 = int_to_ptr.hbm [resolvable:$true] %s20
      %s22 = sshll.u32 [#allocation4], 4
      %s23 = int_to_ptr.vmem [resolvable:$true] %s22
      %25 = dma.hbm_to_vmem [thread:$0]  %s21, 128, %s23, [#allocation5]
    $region5: #{tpu_custom_call.1} parent=1 // pred_fallthru
      _
    // Predicated region
    $region6: #{tpu_custom_call.1} parent=1 // pred_check
      _
    $region7: #{tpu_custom_call.1} parent=1 // pred_check_branch
      %27 = sbr.rel (0) target = $region9
    $region8: #{tpu_custom_call.1} parent=1 // pred_region
      %29 = vsyncadd [#allocation8], 0
      %s31 = sshll.u32 %s1, 4
      %s32 = int_to_ptr.hbm [resolvable:$true] %s31
      %s33 = sshll.u32 [#allocation7], 4
      %s34 = int_to_ptr.vmem [resolvable:$true] %s33
      %36 = dma.hbm_to_vmem [thread:$0]  %s32, 128, %s34, [#allocation8]
    $region9: #{tpu_custom_call.1} parent=1 // pred_fallthru
      _
    // Predicated region
    $region10: #{tpu_custom_call.1} parent=1 // pred_check
      _
    $region11: #{tpu_custom_call.1} parent=1 // pred_check_branch
      %38 = sbr.rel (0) target = $region13
    $region12: #{tpu_custom_call.1} parent=1 // pred_region
      %40 = vsyncadd [#allocation8], 0
      %s41 = sshll.u32 %s2, 4
      %s42 = int_to_ptr.hbm [resolvable:$true] %s41
      %s43 = sshll.u32 [#allocation9], 4
      %s44 = int_to_ptr.vmem [resolvable:$true] %s43
      %49 = dma.hbm_to_vmem [thread:$0]  %s42, 512, %s44, [#allocation8], 128, 128, 8
    $region13: #{tpu_custom_call.1} parent=1 // pred_fallthru
      _
    // Predicated region
    $region14: #{tpu_custom_call.1} parent=1 // pred_check
      _
    $region15: #{tpu_custom_call.1} parent=1 // pred_check_branch
      %51 = sbr.rel (0) target = $region17
    $region16: #{tpu_custom_call.1} parent=1 // pred_region
      _
    $region17: #{tpu_custom_call.1} parent=1 // pred_fallthru
      _
    // Predicated region
    $region18: #{tpu_custom_call.1} parent=1 // pred_check
      _
    $region19: #{tpu_custom_call.1} parent=1 // pred_check_branch
      %53 = sbr.rel (0) target = $region21
    $region20: #{tpu_custom_call.1} parent=1 // pred_region
      %55 = vsyncadd [#allocation11], 0
      %s56 = sshll.u32 %s4, 4
      %s57 = int_to_ptr.hbm [resolvable:$true] %s56
      %s58 = sshll.u32 [#allocation10], 4
      %s59 = int_to_ptr.vmem [resolvable:$true] %s58
      %64 = dma.hbm_to_vmem [thread:$0]  %s57, 512, %s59, [#allocation11], 128, 128, 8
    $region21: #{tpu_custom_call.1} parent=1 // pred_fallthru
      _
    // Predicated region
    $region22: #{tpu_custom_call.1} parent=1 // pred_check
      _
    $region23: #{tpu_custom_call.1} parent=1 // pred_check_branch
      %66 = sbr.rel (0) target = $region25
    $region24: #{tpu_custom_call.1} parent=1 // pred_region
      _
    $region25: #{tpu_custom_call.1} parent=1 // pred_fallthru
      _
    // Predicated region
    $region26: #{tpu_custom_call.1} parent=1 // pred_check
      _
    $region27: #{tpu_custom_call.1} parent=1 // pred_check_branch
      %68 = sbr.rel (0) target = $region29
    $region28: #{tpu_custom_call.1} parent=1 // pred_region
      %70 = dma.done [#allocation5], 128
    $region29: #{tpu_custom_call.1} parent=1 // pred_fallthru
      _
    // Predicated region
    $region30: #{tpu_custom_call.1} parent=1 // pred_check
      _
    $region31: #{tpu_custom_call.1} parent=1 // pred_check_branch
      %72 = sbr.rel (0) target = $region33
    $region32: #{tpu_custom_call.1} parent=1 // pred_region
      %74 = dma.done [#allocation8], 128
    $region33: #{tpu_custom_call.1} parent=1 // pred_fallthru
      _
    // Predicated region
    $region34: #{tpu_custom_call.1} parent=1 // pred_check
      _
    $region35: #{tpu_custom_call.1} parent=1 // pred_check_branch
      %76 = sbr.rel (0) target = $region37
    $region36: #{tpu_custom_call.1} parent=1 // pred_region
      %78 = dma.done [#allocation8], 512
    $region37: #{tpu_custom_call.1} parent=1 // pred_fallthru
      _
    // Predicated region
    $region38: #{tpu_custom_call.1} parent=1 // pred_check
      _
    $region39: #{tpu_custom_call.1} parent=1 // pred_check_branch
      %80 = sbr.rel (0) target = $region41
    $region40: #{tpu_custom_call.1} parent=1 // pred_region
      %82 = dma.done [#allocation11], 512
    $region41: #{tpu_custom_call.1} parent=1 // pred_fallthru
      _
    %p83 = scmp.eq.s32.totalorder 0, 0
    // Predicated region
    $region42: #{tpu_custom_call.1} parent=1 // pred_check
      %p84 = pneg %p83
    $region43: #{tpu_custom_call.1} parent=1 // pred_check_branch
      %86 = sbr.rel (%p84) target = $region45
    $region44: #{tpu_custom_call.1} parent=1 // pred_region
      %v87 = vld [vmem:[#allocation7] sm:$0xff]
      %vm88 = vcmask 261120
      %89 = vst.msk [vmem:[#allocation2] sm:$0xff] %vm88, %v87
    $region45: #{tpu_custom_call.1} parent=1 // pred_fallthru
      _
    %v90 = vld [vmem:[#allocation4] sm:$0xff]
    %v91 = vld [vmem:[#allocation9] sm:$0xff]
    %v92 = vld [vmem:[#allocation9 + $0x8] sm:$0xff]
    %v93 = vld [vmem:[#allocation9 + $0x10] sm:$0xff]
    %v94 = vld [vmem:[#allocation9 + $0x18] sm:$0xff]
    %v95 = vld [vmem:[%s3] sm:$0x1]
    %v97 = vperm.slane %v95, 0
    %vm99 = vcmask 261120
    %v101 = vsel %vm99, %v90, 0
    %103 = vmatpush.msra.mxu0 0.0
    %104 = vmatpush.msra.mxu0 0.0
    %105 = vmatpush.msra.mxu0 0.0
    %106 = vmatpush.msra.mxu0 0.0
    %107 = vmatpush.msra.mxu0 0.0
    %108 = vmatpush.msra.mxu0 0.0
    %109 = vmatpush.msra.mxu0 0.0
    %110 = vmatpush.msra.mxu0 0.0
    %111 = vmatpush.msra.mxu0 0.0
    %112 = vmatpush.msra.mxu0 0.0
    %113 = vmatpush.msra.mxu0 0.0
    %114 = vmatpush.msra.mxu0 0.0
    %115 = vmatpush.msra.mxu0 %v94
    %116 = vmatpush.msra.mxu0 %v93
    %117 = vmatpush.msra.mxu0 %v92
    %118 = vmatpush.msra.mxu0 %v91
    %119 = vmatmul.f32.gmra.mxu0 %v101
    %v120 = vpop.f32.mrf.mxu0
    %v121 = vadd.f32 %v97, %v120
    %122 = vdwg.mxu0
    %vm123 = vcmask 785408
    %124 = vst.msk [vmem:[#allocation3] sm:$0xff] %vm123, %v121
    %v125 = vld [vmem:[#allocation10] sm:$0xff]
    %v126 = vld [vmem:[#allocation10 + $0x8] sm:$0xff]
    %v127 = vld [vmem:[#allocation10 + $0x10] sm:$0xff]
    %v128 = vld [vmem:[#allocation10 + $0x18] sm:$0xff]
    %v129 = vld [vmem:[%s5] sm:$0x1]
    %v130 = vld [vmem:[#allocation2] sm:$0xff]
    %v131 = vld [vmem:[#allocation3] sm:$0xff]
    %v133 = vperm.slane %v129, 0
    %v136 = vsel %vm99, %v130, 0
    %138 = vmatpush.msra.mxu0 0.0
    %139 = vmatpush.msra.mxu0 0.0
    %140 = vmatpush.msra.mxu0 0.0
    %141 = vmatpush.msra.mxu0 0.0
    %142 = vmatpush.msra.mxu0 0.0
    %143 = vmatpush.msra.mxu0 0.0
    %144 = vmatpush.msra.mxu0 0.0
    %145 = vmatpush.msra.mxu0 0.0
    %146 = vmatpush.msra.mxu0 0.0
    %147 = vmatpush.msra.mxu0 0.0
    %148 = vmatpush.msra.mxu0 0.0
    %149 = vmatpush.msra.mxu0 0.0
    %150 = vmatpush.msra.mxu0 %v128
    %151 = vmatpush.msra.mxu0 %v127
    %152 = vmatpush.msra.mxu0 %v126
    %153 = vmatpush.msra.mxu0 %v125
    %154 = vmatmul.f32.gmra.mxu0 %v136
    %v155 = vpop.f32.mrf.mxu0
    %v156 = vadd.f32 %v133, %v155
    %157 = vdwg.mxu0
    %v158 = vadd.f32 %v131, %v156
    %v159 = vmul.f32 %v158, 0.5
    %v160 = vtanh.pop %v159
    %v161 = vadd.f32 %v160, 1.0
    %v162 = vmul.f32 %v161, 0.5
    %164 = vrot.lane.b32.xlu0 %v156, 64
    %v165 = vpop.permute.xlu0 %164
    %v167 = vmul.f32 %v162, %v165
    %169 = vrot.lane.b32.xlu0 %v167, 64
    %v170 = vpop.permute.xlu0 %169
    %v172 = vadd.f32 %v131, %v170
    %v173 = vtanh.pop %v172
    %175 = vrot.lane.b32.xlu0 %v173, 64
    %v176 = vpop.permute.xlu0 %175
    %v178 = vsub.f32 %v130, %v176
    %180 = vrot.lane.b32.xlu0 %v178, 32
    %v181 = vpop.permute.xlu0 %180
    %v183 = vmul.f32 %v162, %v181
    %185 = vrot.lane.b32.xlu0 %v183, 32
    %v186 = vpop.permute.xlu0 %185
    %v188 = vadd.f32 %v173, %v186
    %190 = vrot.lane.b32.xlu0 %v188, 64
    %v191 = vpop.permute.xlu0 %190
    %193 = vst.msk [vmem:[#allocation12] sm:$0xff] %vm99, %v191
    %194 = vst.msk [vmem:[#allocation2] sm:$0xff] %vm99, %v191
    // Predicated region
    $region46: #{tpu_custom_call.1} parent=1 // pred_check
      _
    $region47: #{tpu_custom_call.1} parent=1 // pred_check_branch
      %196 = sbr.rel (0) target = $region49
    $region48: #{tpu_custom_call.1} parent=1 // pred_region
      %198 = vsyncadd [#allocation6], 0
      %s200 = sshll.u32 [#allocation12], 4
      %s201 = int_to_ptr.vmem [resolvable:$true] %s200
      %s202 = sshll.u32 %s6, 4
      %s203 = int_to_ptr.hbm [resolvable:$true] %s202
      %205 = dma.vmem_to_hbm [thread:$0]  %s201, 128, %s203, [#allocation6]
    $region49: #{tpu_custom_call.1} parent=1 // pred_fallthru
      _
    // Predicated region
    $region50: #{tpu_custom_call.1} parent=1 // pred_check
      _
    $region51: #{tpu_custom_call.1} parent=1 // pred_check_branch
      %207 = sbr.rel (0) target = $region53
    $region52: #{tpu_custom_call.1} parent=1 // pred_region
      %209 = dma.done [#allocation6], 128
    $region53: #{tpu_custom_call.1} parent=1 // pred_fallthru
      _
    %210 = vsyncpa [#allocation5], 1
    %211 = vsyncpa [#allocation8], 1
    %212 = vsyncpa [#allocation11], 1
    %213 = vsyncpa [#allocation6], 1

</llo_original>
